<compile_context>
chip_gen: v5e
topology: v5e:2x2
jax: 0.10.0
libtpu: 0.0.40
codegen_flags: <defaults>
</compile_context>

<pallas_src>
import functools

import jax
import jax.numpy as jnp
from jax.experimental import pallas as pl
from jax.experimental.pallas import tpu as pltpu


def _round_up(x: int, m: int) -> int:
    return ((x + m - 1) // m) * m


def _vmem_capacity_bytes() -> int:
    try:
        return int(pltpu.get_tpu_info().vmem_capacity_bytes)
    except Exception:
        return 128 << 20  # v5e / v6e physical VMEM as a conservative fallback


# --------------------------------------------------------------------------
# One-time parameter layout prep (NOT per forward call).
# --------------------------------------------------------------------------
def prepare_mlp_params(params, *, use_bf16: bool = False):
    """Transpose nn.Linear weights to (in, out) and zero-pad output dims to 128.

    params: list of (w, b) with w (out, in), b (out,) — nn.Linear layout.
    Layer 0 keeps its true input dim (x is never padded); layers i>0 take the
    padded output dim of the previous layer as their (padded) input dim.
    Zero padding keeps the math exact.
    """
    in_dim = int(params[0][0].shape[1])
    dims = [in_dim] + [int(w.shape[0]) for (w, _) in params]
    pdims = [in_dim] + [_round_up(d, 128) for d in dims[1:]]
    wdtype = jnp.bfloat16 if use_bf16 else jnp.float32

    wts, bss = [], []
    for i, (w, b) in enumerate(params):
        out_d, in_d = w.shape
        pin, pout = pdims[i], pdims[i + 1]
        wt = jnp.zeros((pin, pout), jnp.float32).at[:in_d, :out_d].set(w.T)
        bp = jnp.zeros((1, pout), jnp.float32).at[0, :out_d].set(b)
        wts.append(wt.astype(wdtype))
        bss.append(bp)  # bias stays f32 (added post-MXU in f32)

    return {
        "wts": tuple(wts),
        "bss": tuple(bss),
        "dims": tuple(dims),
        "pdims": tuple(pdims),
        "use_bf16": use_bf16,
    }


# --------------------------------------------------------------------------
# Kernel: all layers fused on one batch tile resident in VMEM.
# --------------------------------------------------------------------------
def _mlp_kernel(x_ref, *refs, num_layers: int, slope: float, use_bf16: bool):
    """refs = (w0, b0, w1, b1, ..., w_{L-1}, b_{L-1}, o_ref).

    w_i is pre-transposed (in_pad, out_pad); b_i is (1, out_pad) f32.
    """
    o_ref = refs[-1]
    h = x_ref[...].astype(jnp.float32)                 # (TM, in0)
    for i in range(num_layers):
        w = refs[2 * i][...]                           # (in_pad, out_pad)
        b = refs[2 * i + 1][...]                       # (1, out_pad) f32
        lhs = h.astype(jnp.bfloat16) if use_bf16 else h
        h = jnp.dot(lhs, w, preferred_element_type=jnp.float32) + b
        if i != num_layers - 1:
            h = jnp.where(h > 0, h, slope * h)         # LeakyReLU(0.01), f32
    o_ref[...] = h.astype(o_ref.dtype)


# --------------------------------------------------------------------------
# Wrapper: per-call work is exactly one pallas_call (+ a final column slice).
# --------------------------------------------------------------------------
def mlp_forward(x, prepared, *, slope: float = 0.01, act_buffers: int = 2,
                max_tm: int = 2048):
    """x: (B, in_dim) f32; prepared: output of prepare_mlp_params()."""
    batch, in_dim = x.shape
    wts, bss = prepared["wts"], prepared["bss"]
    dims, pdims = prepared["dims"], prepared["pdims"]
    assert in_dim == dims[0], "input feature dim mismatch with prepared params"
    num_layers = len(wts)
    out_dim, pout = dims[-1], pdims[-1]
    max_pad = max(pdims[1:])

    # ---- Generation-aware VMEM budget and batch-tile derivation -----------
    cap = _vmem_capacity_bytes()
    budget = int(0.85 * cap)                            # headroom for Mosaic scratch
    w_bytes = sum(int(w.size) * w.dtype.itemsize for w in wts) \
        + sum(int(b.size) * 4 for b in bss)
    # Budget weights at 2x so the fallback (default double-buffered) path
    # still fits even though we request Buffered(1) for them.
    resident_w = 2 * w_bytes
    # TODO(synk): layers whose padded weights exceed ~50% of the VMEM budget
    # need an N/K-tiled per-layer path (streamed weight column blocks); this
    # fused kernel assumes all weights fit resident in VMEM.

    # Per-batch-row VMEM: pipelined in/out activation tiles + headroom for the
    # largest f32 intermediate (values live in vregs/VMEM inside the kernel).
    per_row = 4 * (act_buffers * pdims[0] + 2 * pout + 3 * max_pad)
    tm = (budget - resident_w) // max(per_row, 1)
    tm = max(8, min(max_tm, (tm // 8) * 8))             # multiple of 8 (f32 sublanes)
    tm = min(tm, _round_up(batch, 8))
    if batch >= 16:
        # >= 2 grid steps so dimension_semantics=("parallel",) can shard the
        # batch across v7x's two TensorCores (free on 1-TC v5e/v6e).
        tm = min(tm, _round_up(pl.cdiv(batch, 2), 8))
    tm = max(tm, 8)

    grid = (pl.cdiv(batch, tm),)                        # ragged last block OK

    # ---- Cost estimate & VMEM limit ---------------------------------------
    flops = 2 * batch * sum(pdims[i] * pdims[i + 1] for i in range(num_layers))
    bytes_accessed = 4 * batch * pdims[0] + w_bytes + 4 * batch * pout
    cost = pl.CostEstimate(flops=flops, transcendentals=0,
                           bytes_accessed=bytes_accessed)

    est = resident_w + tm * per_row
    vmem_limit = int(min(int(0.9 * cap), max(2 * est, 8 << 20)))

    kernel = functools.partial(_mlp_kernel, num_layers=num_layers, slope=slope,
                               use_bf16=prepared["use_bf16"])
    args = [x]
    for wt, bp in zip(wts, bss):
        args.append(wt)
        args.append(bp)

    def build_specs(single_buffer_weights: bool):
        wkw = {"pipeline_mode": pl.Buffered(1)} if single_buffer_weights else {}
        xkw = {"pipeline_mode": pl.Buffered(act_buffers)} if act_buffers != 2 else {}
        in_specs = [pl.BlockSpec((tm, pdims[0]), lambda i: (i, 0), **xkw)]
        for li in range(num_layers):
            pin, po = pdims[li], pdims[li + 1]
            # Weights/biases resident across the whole grid (constant block).
            in_specs.append(pl.BlockSpec((pin, po), lambda i: (0, 0), **wkw))
            in_specs.append(pl.BlockSpec((1, po), lambda i: (0, 0), **wkw))
        out_specs = pl.BlockSpec((tm, pout), lambda i: (i, 0))
        return in_specs, out_specs

    def run(single_buffer_weights: bool):
        in_specs, out_specs = build_specs(single_buffer_weights)
        call = pl.pallas_call(
            kernel,
            out_shape=jax.ShapeDtypeStruct((batch, pout), x.dtype),
            grid=grid,
            in_specs=in_specs,
            out_specs=out_specs,
            compiler_params=pltpu.CompilerParams(
                dimension_semantics=("parallel",),   # shard batch tiles across TCs
                vmem_limit_bytes=vmem_limit,
            ),
            cost_estimate=cost,
        )
        return call(*args)

    try:
        out_padded = run(True)       # single-buffered weights (preferred)
    except Exception:
        out_padded = run(False)      # fallback: default double-buffering
    return out_padded[:, :out_dim]


# --------------------------------------------------------------------------
# Test scaffolding (deterministic init + pure-JAX reference).
# --------------------------------------------------------------------------
def init_mlp_params(key, input_size, hidden_sizes, output_size):
    """Deterministic init matching nn.Linear's shapes (Kaiming-uniform-ish)."""
    dims = [input_size] + list(hidden_sizes) + [output_size]
    params = []
    for i in range(len(dims) - 1):
        in_dim, out_dim = dims[i], dims[i + 1]
        key, kw, kb = jax.random.split(key, 3)
        bound = 1.0 / jnp.sqrt(in_dim)
        w = jax.random.uniform(kw, (out_dim, in_dim), jnp.float32, -bound, bound)
        b = jax.random.uniform(kb, (out_dim,), jnp.float32, -bound, bound)
        params.append((w, b))
    return params


def mlp_reference(x, params):
    n = len(params)
    for i, (w, b) in enumerate(params):
        x = x @ w.T + b
        if i != n - 1:
            x = jnp.where(x > 0, x, 0.01 * x)
    return x


if __name__ == "__main__":
    key = jax.random.PRNGKey(0)
    batch = 8
    input_size, hidden_sizes, output_size = 32, [64, 48], 16

    key, kx, kp = jax.random.split(key, 3)
    x = jax.random.normal(kx, (batch, input_size), jnp.float32)
    params = init_mlp_params(kp, input_size, hidden_sizes, output_size)

    prepared = prepare_mlp_params(params)     # one-time layout prep (init-time)
    out = mlp_forward(x, prepared)
    out = jax.block_until_ready(out)

    ref = mlp_reference(x, params)
    assert out.shape == (batch, output_size)
    assert jnp.allclose(out, ref, atol=1e-5, rtol=1e-5), "mismatch vs reference"

    print("KERNEL_OK")
</pallas_src>

<mosaic_0001>
module attributes {stable_mosaic.version = 11 : i64} {
  func.func @_mlp_kernel(%arg0: i32, %arg1: memref<8x32xf32, #tpu.memory_space<vmem>>, %arg2: memref<32x128xf32, #tpu.memory_space<vmem>>, %arg3: memref<1x128xf32, #tpu.memory_space<vmem>>, %arg4: memref<128x128xf32, #tpu.memory_space<vmem>>, %arg5: memref<1x128xf32, #tpu.memory_space<vmem>>, %arg6: memref<128x128xf32, #tpu.memory_space<vmem>>, %arg7: memref<1x128xf32, #tpu.memory_space<vmem>>, %arg8: memref<8x128xf32, #tpu.memory_space<vmem>>) attributes {dimension_semantics = [#tpu.dimension_semantics<parallel>], iteration_bounds = array<i64: 1>, scalar_prefetch = 0 : i64, scratch_operands = 0 : i64, tpu.core_type = #tpu.core_type<tc>, window_params = [{transform_indices = @transform_0, window_bounds = array<i64: 8, 32>}, {pipeline_mode = #tpu.pipeline_mode<synchronous>, transform_indices = @transform_1, window_bounds = array<i64: 32, 128>}, {pipeline_mode = #tpu.pipeline_mode<synchronous>, transform_indices = @transform_2, window_bounds = array<i64: 1, 128>}, {pipeline_mode = #tpu.pipeline_mode<synchronous>, transform_indices = @transform_3, window_bounds = array<i64: 128, 128>}, {pipeline_mode = #tpu.pipeline_mode<synchronous>, transform_indices = @transform_4, window_bounds = array<i64: 1, 128>}, {pipeline_mode = #tpu.pipeline_mode<synchronous>, transform_indices = @transform_5, window_bounds = array<i64: 128, 128>}, {pipeline_mode = #tpu.pipeline_mode<synchronous>, transform_indices = @transform_6, window_bounds = array<i64: 1, 128>}, {transform_indices = @transform_7, window_bounds = array<i64: 8, 128>}]} {
    %c0 = arith.constant 0 : index
    %c0_0 = arith.constant 0 : index
    %0 = vector.load %arg1[%c0, %c0_0] : memref<8x32xf32, #tpu.memory_space<vmem>>, vector<8x32xf32>
    %c0_1 = arith.constant 0 : index
    %c0_2 = arith.constant 0 : index
    %1 = vector.load %arg2[%c0_1, %c0_2] : memref<32x128xf32, #tpu.memory_space<vmem>>, vector<32x128xf32>
    %c0_3 = arith.constant 0 : index
    %c0_4 = arith.constant 0 : index
    %2 = vector.load %arg3[%c0_3, %c0_4] : memref<1x128xf32, #tpu.memory_space<vmem>>, vector<1x128xf32>
    %cst = arith.constant dense<0.000000e+00> : vector<8x128xf32>
    %3 = tpu.matmul %0, %1, %cst {dimension_numbers = #tpu.dot_dimension_numbers<[1], [0], [0], [1], [0, 0, 1, 1], [], []>} : vector<8x32xf32>, vector<32x128xf32>, vector<8x128xf32> -> vector<8x128xf32>
    %4 = vector.broadcast %2 : vector<1x128xf32> to vector<8x128xf32>
    %5 = arith.addf %3, %4 : vector<8x128xf32>
    %cst_5 = arith.constant 0.000000e+00 : f32
    %6 = vector.broadcast %cst_5 : f32 to vector<8x128xf32>
    %7 = arith.cmpf ogt, %5, %6 : vector<8x128xf32>
    %cst_6 = arith.constant 0.00999999977 : f32
    %8 = vector.broadcast %cst_6 : f32 to vector<8x128xf32>
    %9 = arith.mulf %8, %5 : vector<8x128xf32>
    %10 = arith.select %7, %5, %9 : vector<8x128xi1>, vector<8x128xf32>
    %c0_7 = arith.constant 0 : index
    %c0_8 = arith.constant 0 : index
    %11 = vector.load %arg4[%c0_7, %c0_8] : memref<128x128xf32, #tpu.memory_space<vmem>>, vector<128x128xf32>
    %c0_9 = arith.constant 0 : index
    %c0_10 = arith.constant 0 : index
    %12 = vector.load %arg5[%c0_9, %c0_10] : memref<1x128xf32, #tpu.memory_space<vmem>>, vector<1x128xf32>
    %cst_11 = arith.constant dense<0.000000e+00> : vector<8x128xf32>
    %13 = tpu.matmul %10, %11, %cst_11 {dimension_numbers = #tpu.dot_dimension_numbers<[1], [0], [0], [1], [0, 0, 1, 1], [], []>} : vector<8x128xf32>, vector<128x128xf32>, vector<8x128xf32> -> vector<8x128xf32>
    %14 = vector.broadcast %12 : vector<1x128xf32> to vector<8x128xf32>
    %15 = arith.addf %13, %14 : vector<8x128xf32>
    %cst_12 = arith.constant 0.000000e+00 : f32
    %16 = vector.broadcast %cst_12 : f32 to vector<8x128xf32>
    %17 = arith.cmpf ogt, %15, %16 : vector<8x128xf32>
    %cst_13 = arith.constant 0.00999999977 : f32
    %18 = vector.broadcast %cst_13 : f32 to vector<8x128xf32>
    %19 = arith.mulf %18, %15 : vector<8x128xf32>
    %20 = arith.select %17, %15, %19 : vector<8x128xi1>, vector<8x128xf32>
    %c0_14 = arith.constant 0 : index
    %c0_15 = arith.constant 0 : index
    %21 = vector.load %arg6[%c0_14, %c0_15] : memref<128x128xf32, #tpu.memory_space<vmem>>, vector<128x128xf32>
    %c0_16 = arith.constant 0 : index
    %c0_17 = arith.constant 0 : index
    %22 = vector.load %arg7[%c0_16, %c0_17] : memref<1x128xf32, #tpu.memory_space<vmem>>, vector<1x128xf32>
    %cst_18 = arith.constant dense<0.000000e+00> : vector<8x128xf32>
    %23 = tpu.matmul %20, %21, %cst_18 {dimension_numbers = #tpu.dot_dimension_numbers<[1], [0], [0], [1], [0, 0, 1, 1], [], []>} : vector<8x128xf32>, vector<128x128xf32>, vector<8x128xf32> -> vector<8x128xf32>
    %24 = vector.broadcast %22 : vector<1x128xf32> to vector<8x128xf32>
    %25 = arith.addf %23, %24 : vector<8x128xf32>
    %c0_19 = arith.constant 0 : index
    %c0_20 = arith.constant 0 : index
    %26 = vector.load %arg8[%c0_19, %c0_20] : memref<8x128xf32, #tpu.memory_space<vmem>>, vector<8x128xf32>
    tpu.vector_store %arg8[%c0_19, %c0_20], %25 {strides = array<i32>} : memref<8x128xf32, #tpu.memory_space<vmem>>, vector<8x128xf32>,
    return
  }
  func.func @transform_0(%arg0: i32) -> (i32, i32) {
    %c0_i32 = arith.constant 0 : i32
    %c0_i32_0 = arith.constant 0 : i32
    return %arg0, %c0_i32 : i32, i32
  }
  func.func @transform_1(%arg0: i32) -> (i32, i32) {
    %c0_i32 = arith.constant 0 : i32
    %c0_i32_0 = arith.constant 0 : i32
    %c0_i32_1 = arith.constant 0 : i32
    return %c0_i32, %c0_i32_0 : i32, i32
  }
  func.func @transform_2(%arg0: i32) -> (i32, i32) {
    %c0_i32 = arith.constant 0 : i32
    %c0_i32_0 = arith.constant 0 : i32
    %c0_i32_1 = arith.constant 0 : i32
    return %c0_i32, %c0_i32_0 : i32, i32
  }
  func.func @transform_3(%arg0: i32) -> (i32, i32) {
    %c0_i32 = arith.constant 0 : i32
    %c0_i32_0 = arith.constant 0 : i32
    %c0_i32_1 = arith.constant 0 : i32
    return %c0_i32, %c0_i32_0 : i32, i32
  }
  func.func @transform_4(%arg0: i32) -> (i32, i32) {
    %c0_i32 = arith.constant 0 : i32
    %c0_i32_0 = arith.constant 0 : i32
    %c0_i32_1 = arith.constant 0 : i32
    return %c0_i32, %c0_i32_0 : i32, i32
  }
  func.func @transform_5(%arg0: i32) -> (i32, i32) {
    %c0_i32 = arith.constant 0 : i32
    %c0_i32_0 = arith.constant 0 : i32
    %c0_i32_1 = arith.constant 0 : i32
    return %c0_i32, %c0_i32_0 : i32, i32
  }
  func.func @transform_6(%arg0: i32) -> (i32, i32) {
    %c0_i32 = arith.constant 0 : i32
    %c0_i32_0 = arith.constant 0 : i32
    %c0_i32_1 = arith.constant 0 : i32
    return %c0_i32, %c0_i32_0 : i32, i32
  }
  func.func @transform_7(%arg0: i32) -> (i32, i32) {
    %c0_i32 = arith.constant 0 : i32
    %c0_i32_0 = arith.constant 0 : i32
    return %arg0, %c0_i32 : i32, i32
  }
}

module attributes {stable_mosaic.version = 11 : i64} {
  func.func @_mlp_kernel(%arg0: i32, %arg1: memref<8x32xf32, #tpu.memory_space<vmem>>, %arg2: memref<32x128xf32, #tpu.memory_space<vmem>>, %arg3: memref<1x128xf32, #tpu.memory_space<vmem>>, %arg4: memref<128x128xf32, #tpu.memory_space<vmem>>, %arg5: memref<1x128xf32, #tpu.memory_space<vmem>>, %arg6: memref<128x128xf32, #tpu.memory_space<vmem>>, %arg7: memref<1x128xf32, #tpu.memory_space<vmem>>, %arg8: memref<8x128xf32, #tpu.memory_space<vmem>>) attributes {dimension_semantics = [#tpu.dimension_semantics<parallel>], iteration_bounds = array<i64: 1>, scalar_prefetch = 0 : i64, scratch_operands = 0 : i64, tpu.core_type = #tpu.core_type<tc>, window_params = [{transform_indices = @transform_0, window_bounds = array<i64: 8, 32>}, {pipeline_mode = #tpu.pipeline_mode<synchronous>, transform_indices = @transform_1, window_bounds = array<i64: 32, 128>}, {pipeline_mode = #tpu.pipeline_mode<synchronous>, transform_indices = @transform_2, window_bounds = array<i64: 1, 128>}, {pipeline_mode = #tpu.pipeline_mode<synchronous>, transform_indices = @transform_3, window_bounds = array<i64: 128, 128>}, {pipeline_mode = #tpu.pipeline_mode<synchronous>, transform_indices = @transform_4, window_bounds = array<i64: 1, 128>}, {pipeline_mode = #tpu.pipeline_mode<synchronous>, transform_indices = @transform_5, window_bounds = array<i64: 128, 128>}, {pipeline_mode = #tpu.pipeline_mode<synchronous>, transform_indices = @transform_6, window_bounds = array<i64: 1, 128>}, {transform_indices = @transform_7, window_bounds = array<i64: 8, 128>}]} {
    %c0 = arith.constant 0 : index
    %c0_0 = arith.constant 0 : index
    %0 = vector.load %arg1[%c0, %c0_0] : memref<8x32xf32, #tpu.memory_space<vmem>>, vector<8x32xf32>
    %c0_1 = arith.constant 0 : index
    %c0_2 = arith.constant 0 : index
    %1 = vector.load %arg2[%c0_1, %c0_2] : memref<32x128xf32, #tpu.memory_space<vmem>>, vector<32x128xf32>
    %c0_3 = arith.constant 0 : index
    %c0_4 = arith.constant 0 : index
    %2 = vector.load %arg3[%c0_3, %c0_4] : memref<1x128xf32, #tpu.memory_space<vmem>>, vector<1x128xf32>
    %cst = arith.constant dense<0.000000e+00> : vector<8x128xf32>
    %3 = tpu.matmul %0, %1, %cst {dimension_numbers = #tpu.dot_dimension_numbers<[1], [0], [0], [1], [0, 0, 1, 1], [], []>} : vector<8x32xf32>, vector<32x128xf32>, vector<8x128xf32> -> vector<8x128xf32>
    %4 = vector.broadcast %2 : vector<1x128xf32> to vector<8x128xf32>
    %5 = arith.addf %3, %4 : vector<8x128xf32>
    %cst_5 = arith.constant 0.000000e+00 : f32
    %6 = vector.broadcast %cst_5 : f32 to vector<8x128xf32>
    %7 = arith.cmpf ogt, %5, %6 : vector<8x128xf32>
    %cst_6 = arith.constant 0.00999999977 : f32
    %8 = vector.broadcast %cst_6 : f32 to vector<8x128xf32>
    %9 = arith.mulf %8, %5 : vector<8x128xf32>
    %10 = arith.select %7, %5, %9 : vector<8x128xi1>, vector<8x128xf32>
    %c0_7 = arith.constant 0 : index
    %c0_8 = arith.constant 0 : index
    %11 = vector.load %arg4[%c0_7, %c0_8] : memref<128x128xf32, #tpu.memory_space<vmem>>, vector<128x128xf32>
    %c0_9 = arith.constant 0 : index
    %c0_10 = arith.constant 0 : index
    %12 = vector.load %arg5[%c0_9, %c0_10] : memref<1x128xf32, #tpu.memory_space<vmem>>, vector<1x128xf32>
    %cst_11 = arith.constant dense<0.000000e+00> : vector<8x128xf32>
    %13 = tpu.matmul %10, %11, %cst_11 {dimension_numbers = #tpu.dot_dimension_numbers<[1], [0], [0], [1], [0, 0, 1, 1], [], []>} : vector<8x128xf32>, vector<128x128xf32>, vector<8x128xf32> -> vector<8x128xf32>
    %14 = vector.broadcast %12 : vector<1x128xf32> to vector<8x128xf32>
    %15 = arith.addf %13, %14 : vector<8x128xf32>
    %cst_12 = arith.constant 0.000000e+00 : f32
    %16 = vector.broadcast %cst_12 : f32 to vector<8x128xf32>
    %17 = arith.cmpf ogt, %15, %16 : vector<8x128xf32>
    %cst_13 = arith.constant 0.00999999977 : f32
    %18 = vector.broadcast %cst_13 : f32 to vector<8x128xf32>
    %19 = arith.mulf %18, %15 : vector<8x128xf32>
    %20 = arith.select %17, %15, %19 : vector<8x128xi1>, vector<8x128xf32>
    %c0_14 = arith.constant 0 : index
    %c0_15 = arith.constant 0 : index
    %21 = vector.load %arg6[%c0_14, %c0_15] : memref<128x128xf32, #tpu.memory_space<vmem>>, vector<128x128xf32>
    %c0_16 = arith.constant 0 : index
    %c0_17 = arith.constant 0 : index
    %22 = vector.load %arg7[%c0_16, %c0_17] : memref<1x128xf32, #tpu.memory_space<vmem>>, vector<1x128xf32>
    %cst_18 = arith.constant dense<0.000000e+00> : vector<8x128xf32>
    %23 = tpu.matmul %20, %21, %cst_18 {dimension_numbers = #tpu.dot_dimension_numbers<[1], [0], [0], [1], [0, 0, 1, 1], [], []>} : vector<8x128xf32>, vector<128x128xf32>, vector<8x128xf32> -> vector<8x128xf32>
    %24 = vector.broadcast %22 : vector<1x128xf32> to vector<8x128xf32>
    %25 = arith.addf %23, %24 : vector<8x128xf32>
    %c0_19 = arith.constant 0 : index
    %c0_20 = arith.constant 0 : index
    %26 = vector.load %arg8[%c0_19, %c0_20] : memref<8x128xf32, #tpu.memory_space<vmem>>, vector<8x128xf32>
    tpu.vector_store %arg8[%c0_19, %c0_20], %25 {strides = array<i32>} : memref<8x128xf32, #tpu.memory_space<vmem>>, vector<8x128xf32>,
    return
  }
  func.func @transform_0(%arg0: i32) -> (i32, i32) {
    %c0_i32 = arith.constant 0 : i32
    %c0_i32_0 = arith.constant 0 : i32
    return %arg0, %c0_i32 : i32, i32
  }
  func.func @transform_1(%arg0: i32) -> (i32, i32) {
    %c0_i32 = arith.constant 0 : i32
    %c0_i32_0 = arith.constant 0 : i32
    %c0_i32_1 = arith.constant 0 : i32
    return %c0_i32, %c0_i32_0 : i32, i32
  }
  func.func @transform_2(%arg0: i32) -> (i32, i32) {
    %c0_i32 = arith.constant 0 : i32
    %c0_i32_0 = arith.constant 0 : i32
    %c0_i32_1 = arith.constant 0 : i32
    return %c0_i32, %c0_i32_0 : i32, i32
  }
  func.func @transform_3(%arg0: i32) -> (i32, i32) {
    %c0_i32 = arith.constant 0 : i32
    %c0_i32_0 = arith.constant 0 : i32
    %c0_i32_1 = arith.constant 0 : i32
    return %c0_i32, %c0_i32_0 : i32, i32
  }
  func.func @transform_4(%arg0: i32) -> (i32, i32) {
    %c0_i32 = arith.constant 0 : i32
    %c0_i32_0 = arith.constant 0 : i32
    %c0_i32_1 = arith.constant 0 : i32
    return %c0_i32, %c0_i32_0 : i32, i32
  }
  func.func @transform_5(%arg0: i32) -> (i32, i32) {
    %c0_i32 = arith.constant 0 : i32
    %c0_i32_0 = arith.constant 0 : i32
    %c0_i32_1 = arith.constant 0 : i32
    return %c0_i32, %c0_i32_0 : i32, i32
  }
  func.func @transform_6(%arg0: i32) -> (i32, i32) {
    %c0_i32 = arith.constant 0 : i32
    %c0_i32_0 = arith.constant 0 : i32
    %c0_i32_1 = arith.constant 0 : i32
    return %c0_i32, %c0_i32_0 : i32, i32
  }
  func.func @transform_7(%arg0: i32) -> (i32, i32) {
    %c0_i32 = arith.constant 0 : i32
    %c0_i32_0 = arith.constant 0 : i32
    return %arg0, %c0_i32 : i32, i32
  }
}

</mosaic_0001>

<llo_original>
// kernel: tpu_custom_call.1
$region0: #{tpu_custom_call.1}
  #allocation0 [shape = 'u32[]', space=smem, size = 0x4, offset = 0x4, fixed_abs, tag = 'smem constant byte address 0x4 - core index']
  #allocation1 [shape = 'u32[72,128]{1,0:T(1,128)}', space=vmem, size = 0x9000, scoped, tag = 'internal scratch']
  %s0 = inlined_call_operand.hbm [shape: f32[8,32], index: 0, kind: input, shape index: {}]
  %s1 = inlined_call_operand.hbm [shape: f32[32,128], index: 1, kind: input, shape index: {}]
  %s2 = inlined_call_operand.vmem [shape: f32[1,128], index: 2, kind: input, shape index: {}]
  %s3 = inlined_call_operand.hbm [shape: f32[128,128], index: 3, kind: input, shape index: {}]
  %s4 = inlined_call_operand.vmem [shape: f32[1,128], index: 4, kind: input, shape index: {}]
  %s5 = inlined_call_operand.hbm [shape: f32[128,128], index: 5, kind: input, shape index: {}]
  %s6 = inlined_call_operand.vmem [shape: f32[1,128], index: 6, kind: input, shape index: {}]
  %s7 = inlined_call_operand.hbm [shape: f32[8,128], index: 7, kind: output, shape index: {}]
  %s8 = sld [smem:[#allocation0]]
  $region54: #{tpu_custom_call.1} parent=0
    _
  %s10 = ssub.s32 1, %s8
  %s11 = scalar_select 0, %s10, %s8
  $region1: #{tpu_custom_call.1} parent=0
    #allocation2 [shape = 'u8[4096]{0}', space=vmem, size = 0x1000, scoped, tag = 'input window, operand 0, single buffered']
    #allocation3 [shape = 's32[1]{0}', space=sflag, size = 0x4, scoped, tag = 'scoped memory for tpu_custom_call.1']
    #allocation4 [shape = 's32[1]{0}', space=sflag, size = 0x4, scoped, tag = 'scoped memory for tpu_custom_call.1']
    #allocation5 [shape = 'u8[16384]{0}', space=vmem, size = 0x4000, scoped, tag = 'input window, operand 1, single buffered']
    #allocation6 [shape = 's32[1]{0}', space=sflag, size = 0x4, scoped, tag = 'scoped memory for tpu_custom_call.1']
    #allocation7 [shape = 'u8[65536]{0}', space=vmem, size = 0x10000, scoped, tag = 'input window, operand 3, single buffered']
    #allocation8 [shape = 'u8[65536]{0}', space=vmem, size = 0x10000, scoped, tag = 'input window, operand 5, single buffered']
    #allocation9 [shape = 's32[1]{0}', space=sflag, size = 0x4, scoped, tag = 'scoped memory for tpu_custom_call.1']
    #allocation10 [shape = 'u8[4096]{0}', space=vmem, size = 0x1000, scoped, tag = 'output window, operand 0, single buffered']
    %12 = vsyncpa [#allocation3], 0
    %13 = vsyncpa [#allocation6], 0
    %14 = vsyncpa [#allocation9], 0
    %15 = vsyncpa [#allocation4], 0
    // Predicated region
    $region2: #{tpu_custom_call.1} parent=1 // pred_check
      _
    $region3: #{tpu_custom_call.1} parent=1 // pred_check_branch
      %17 = sbr.rel (0) target = $region5
    $region4: #{tpu_custom_call.1} parent=1 // pred_region
      %19 = vsyncadd [#allocation3], 0
      %s21 = sshll.u32 %s0, 4
      %s22 = int_to_ptr.hbm [resolvable:$true] %s21
      %s23 = sshll.u32 [#allocation2], 4
      %s24 = int_to_ptr.vmem [resolvable:$true] %s23
      %26 = dma.hbm_to_vmem [thread:$0]  %s22, 128, %s24, [#allocation3]
    $region5: #{tpu_custom_call.1} parent=1 // pred_fallthru
      _
    // Predicated region
    $region6: #{tpu_custom_call.1} parent=1 // pred_check
      _
    $region7: #{tpu_custom_call.1} parent=1 // pred_check_branch
      %28 = sbr.rel (0) target = $region9
    $region8: #{tpu_custom_call.1} parent=1 // pred_region
      %30 = vsyncadd [#allocation6], 0
      %s31 = sshll.u32 %s1, 4
      %s32 = int_to_ptr.hbm [resolvable:$true] %s31
      %s33 = sshll.u32 [#allocation5], 4
      %s34 = int_to_ptr.vmem [resolvable:$true] %s33
      %39 = dma.hbm_to_vmem [thread:$0]  %s32, 512, %s34, [#allocation6], 128, 128, 8
    $region9: #{tpu_custom_call.1} parent=1 // pred_fallthru
      _
    // Predicated region
    $region10: #{tpu_custom_call.1} parent=1 // pred_check
      _
    $region11: #{tpu_custom_call.1} parent=1 // pred_check_branch
      %41 = sbr.rel (0) target = $region13
    $region12: #{tpu_custom_call.1} parent=1 // pred_region
      _
    $region13: #{tpu_custom_call.1} parent=1 // pred_fallthru
      _
    // Predicated region
    $region14: #{tpu_custom_call.1} parent=1 // pred_check
      _
    $region15: #{tpu_custom_call.1} parent=1 // pred_check_branch
      %43 = sbr.rel (0) target = $region17
    $region16: #{tpu_custom_call.1} parent=1 // pred_region
      %45 = vsyncadd [#allocation6], 0
      %s46 = sshll.u32 %s3, 4
      %s47 = int_to_ptr.hbm [resolvable:$true] %s46
      %s48 = sshll.u32 [#allocation7], 4
      %s49 = int_to_ptr.vmem [resolvable:$true] %s48
      %54 = dma.hbm_to_vmem [thread:$0]  %s47, 2048, %s49, [#allocation6], 128, 128, 8
    $region17: #{tpu_custom_call.1} parent=1 // pred_fallthru
      _
    // Predicated region
    $region18: #{tpu_custom_call.1} parent=1 // pred_check
      _
    $region19: #{tpu_custom_call.1} parent=1 // pred_check_branch
      %56 = sbr.rel (0) target = $region21
    $region20: #{tpu_custom_call.1} parent=1 // pred_region
      _
    $region21: #{tpu_custom_call.1} parent=1 // pred_fallthru
      _
    // Predicated region
    $region22: #{tpu_custom_call.1} parent=1 // pred_check
      _
    $region23: #{tpu_custom_call.1} parent=1 // pred_check_branch
      %58 = sbr.rel (0) target = $region25
    $region24: #{tpu_custom_call.1} parent=1 // pred_region
      %60 = vsyncadd [#allocation9], 0
      %s61 = sshll.u32 %s5, 4
      %s62 = int_to_ptr.hbm [resolvable:$true] %s61
      %s63 = sshll.u32 [#allocation8], 4
      %s64 = int_to_ptr.vmem [resolvable:$true] %s63
      %69 = dma.hbm_to_vmem [thread:$0]  %s62, 2048, %s64, [#allocation9], 128, 128, 8
    $region25: #{tpu_custom_call.1} parent=1 // pred_fallthru
      _
    // Predicated region
    $region26: #{tpu_custom_call.1} parent=1 // pred_check
      _
    $region27: #{tpu_custom_call.1} parent=1 // pred_check_branch
      %71 = sbr.rel (0) target = $region29
    $region28: #{tpu_custom_call.1} parent=1 // pred_region
      _
    $region29: #{tpu_custom_call.1} parent=1 // pred_fallthru
      _
    // Predicated region
    $region30: #{tpu_custom_call.1} parent=1 // pred_check
      _
    $region31: #{tpu_custom_call.1} parent=1 // pred_check_branch
      %73 = sbr.rel (0) target = $region33
    $region32: #{tpu_custom_call.1} parent=1 // pred_region
      %75 = dma.done [#allocation3], 128
    $region33: #{tpu_custom_call.1} parent=1 // pred_fallthru
      _
    // Predicated region
    $region34: #{tpu_custom_call.1} parent=1 // pred_check
      _
    $region35: #{tpu_custom_call.1} parent=1 // pred_check_branch
      %77 = sbr.rel (0) target = $region37
    $region36: #{tpu_custom_call.1} parent=1 // pred_region
      %79 = dma.done [#allocation6], 512
    $region37: #{tpu_custom_call.1} parent=1 // pred_fallthru
      _
    // Predicated region
    $region38: #{tpu_custom_call.1} parent=1 // pred_check
      _
    $region39: #{tpu_custom_call.1} parent=1 // pred_check_branch
      %81 = sbr.rel (0) target = $region41
    $region40: #{tpu_custom_call.1} parent=1 // pred_region
      %83 = dma.done [#allocation6], 2048
    $region41: #{tpu_custom_call.1} parent=1 // pred_fallthru
      _
    // Predicated region
    $region42: #{tpu_custom_call.1} parent=1 // pred_check
      _
    $region43: #{tpu_custom_call.1} parent=1 // pred_check_branch
      %85 = sbr.rel (0) target = $region45
    $region44: #{tpu_custom_call.1} parent=1 // pred_region
      %87 = dma.done [#allocation9], 2048
    $region45: #{tpu_custom_call.1} parent=1 // pred_fallthru
      _
    %v88 = vld [vmem:[#allocation2] sm:$0xff]
    %v89 = vld [vmem:[#allocation5] sm:$0xff]
    %v90 = vld [vmem:[#allocation5 + $0x8] sm:$0xff]
    %v91 = vld [vmem:[#allocation5 + $0x10] sm:$0xff]
    %v92 = vld [vmem:[#allocation5 + $0x18] sm:$0xff]
    %v93 = vld [vmem:[%s2] sm:$0x1]
    %v95 = vperm.slane %v93, 0
    %vm97 = vcmask 261120
    %v99 = vsel %vm97, %v88, 0
    %101 = vmatpush.msra.mxu0 0.0
    %102 = vmatpush.msra.mxu0 0.0
    %103 = vmatpush.msra.mxu0 0.0
    %104 = vmatpush.msra.mxu0 0.0
    %105 = vmatpush.msra.mxu0 0.0
    %106 = vmatpush.msra.mxu0 0.0
    %107 = vmatpush.msra.mxu0 0.0
    %108 = vmatpush.msra.mxu0 0.0
    %109 = vmatpush.msra.mxu0 0.0
    %110 = vmatpush.msra.mxu0 0.0
    %111 = vmatpush.msra.mxu0 0.0
    %112 = vmatpush.msra.mxu0 0.0
    %113 = vmatpush.msra.mxu0 %v92
    %114 = vmatpush.msra.mxu0 %v91
    %115 = vmatpush.msra.mxu0 %v90
    %116 = vmatpush.msra.mxu0 %v89
    %117 = vmatmul.f32.gmra.mxu0 %v99
    %v118 = vpop.f32.mrf.mxu0
    %v119 = vadd.f32 %v95, %v118
    %120 = vdwg.mxu0
    %vm121 = vcmp.gt.f32.partialorder %v119, 0.0
    %v122 = vmul.f32 %v119, 0.01
    %v123 = vsel %vm121, %v119, %v122
    %v124 = vld [vmem:[#allocation7] sm:$0xff]
    %v125 = vld [vmem:[#allocation7 + $0x8] sm:$0xff]
    %v126 = vld [vmem:[#allocation7 + $0x10] sm:$0xff]
    %v127 = vld [vmem:[#allocation7 + $0x18] sm:$0xff]
    %v128 = vld [vmem:[#allocation7 + $0x20] sm:$0xff]
    %v129 = vld [vmem:[#allocation7 + $0x28] sm:$0xff]
    %v130 = vld [vmem:[#allocation7 + $0x30] sm:$0xff]
    %v131 = vld [vmem:[#allocation7 + $0x38] sm:$0xff]
    %v132 = vld [vmem:[#allocation7 + $0x40] sm:$0xff]
    %v133 = vld [vmem:[#allocation7 + $0x48] sm:$0xff]
    %v134 = vld [vmem:[#allocation7 + $0x50] sm:$0xff]
    %v135 = vld [vmem:[#allocation7 + $0x58] sm:$0xff]
    %v136 = vld [vmem:[#allocation7 + $0x60] sm:$0xff]
    %v137 = vld [vmem:[#allocation7 + $0x68] sm:$0xff]
    %v138 = vld [vmem:[#allocation7 + $0x70] sm:$0xff]
    %v139 = vld [vmem:[#allocation7 + $0x78] sm:$0xff]
    %v140 = vld [vmem:[%s4] sm:$0x1]
    %v142 = vperm.slane %v140, 0
    %144 = vmatpush.msra.mxu0 %v139
    %145 = vmatpush.msra.mxu0 %v138
    %146 = vmatpush.msra.mxu0 %v137
    %147 = vmatpush.msra.mxu0 %v136
    %148 = vmatpush.msra.mxu0 %v135
    %149 = vmatpush.msra.mxu0 %v134
    %150 = vmatpush.msra.mxu0 %v133
    %151 = vmatpush.msra.mxu0 %v132
    %152 = vmatpush.msra.mxu0 %v131
    %153 = vmatpush.msra.mxu0 %v130
    %154 = vmatpush.msra.mxu0 %v129
    %155 = vmatpush.msra.mxu0 %v128
    %156 = vmatpush.msra.mxu0 %v127
    %157 = vmatpush.msra.mxu0 %v126
    %158 = vmatpush.msra.mxu0 %v125
    %159 = vmatpush.msra.mxu0 %v124
    %160 = vmatmul.f32.gmra.mxu0 %v123
    %v161 = vpop.f32.mrf.mxu0
    %v162 = vadd.f32 %v142, %v161
    %163 = vdwg.mxu0
    %vm164 = vcmp.gt.f32.partialorder %v162, 0.0
    %v165 = vmul.f32 %v162, 0.01
    %v166 = vsel %vm164, %v162, %v165
    %v167 = vld [vmem:[#allocation8] sm:$0xff]
    %v168 = vld [vmem:[#allocation8 + $0x8] sm:$0xff]
    %v169 = vld [vmem:[#allocation8 + $0x10] sm:$0xff]
    %v170 = vld [vmem:[#allocation8 + $0x18] sm:$0xff]
    %v171 = vld [vmem:[#allocation8 + $0x20] sm:$0xff]
    %v172 = vld [vmem:[#allocation8 + $0x28] sm:$0xff]
    %v173 = vld [vmem:[#allocation8 + $0x30] sm:$0xff]
    %v174 = vld [vmem:[#allocation8 + $0x38] sm:$0xff]
    %v175 = vld [vmem:[#allocation8 + $0x40] sm:$0xff]
    %v176 = vld [vmem:[#allocation8 + $0x48] sm:$0xff]
    %v177 = vld [vmem:[#allocation8 + $0x50] sm:$0xff]
    %v178 = vld [vmem:[#allocation8 + $0x58] sm:$0xff]
    %v179 = vld [vmem:[#allocation8 + $0x60] sm:$0xff]
    %v180 = vld [vmem:[#allocation8 + $0x68] sm:$0xff]
    %v181 = vld [vmem:[#allocation8 + $0x70] sm:$0xff]
    %v182 = vld [vmem:[#allocation8 + $0x78] sm:$0xff]
    %v183 = vld [vmem:[%s6] sm:$0x1]
    %v185 = vperm.slane %v183, 0
    %187 = vmatpush.msra.mxu0 %v182
    %188 = vmatpush.msra.mxu0 %v181
    %189 = vmatpush.msra.mxu0 %v180
    %190 = vmatpush.msra.mxu0 %v179
    %191 = vmatpush.msra.mxu0 %v178
    %192 = vmatpush.msra.mxu0 %v177
    %193 = vmatpush.msra.mxu0 %v176
    %194 = vmatpush.msra.mxu0 %v175
    %195 = vmatpush.msra.mxu0 %v174
    %196 = vmatpush.msra.mxu0 %v173
    %197 = vmatpush.msra.mxu0 %v172
    %198 = vmatpush.msra.mxu0 %v171
    %199 = vmatpush.msra.mxu0 %v170
    %200 = vmatpush.msra.mxu0 %v169
    %201 = vmatpush.msra.mxu0 %v168
    %202 = vmatpush.msra.mxu0 %v167
    %203 = vmatmul.f32.gmra.mxu0 %v166
    %v204 = vpop.f32.mrf.mxu0
    %v205 = vadd.f32 %v185, %v204
    %206 = vdwg.mxu0
    %207 = vst [vmem:[#allocation10] sm:$0xff] %v205
    // Predicated region
    $region46: #{tpu_custom_call.1} parent=1 // pred_check
      _
    $region47: #{tpu_custom_call.1} parent=1 // pred_check_branch
      %209 = sbr.rel (0) target = $region49
    $region48: #{tpu_custom_call.1} parent=1 // pred_region
      %211 = vsyncadd [#allocation4], 0
      %s213 = sshll.u32 [#allocation10], 4
      %s214 = int_to_ptr.vmem [resolvable:$true] %s213
      %s215 = sshll.u32 %s7, 4
      %s216 = int_to_ptr.hbm [resolvable:$true] %s215
      %218 = dma.vmem_to_hbm [thread:$0]  %s214, 128, %s216, [#allocation4]
    $region49: #{tpu_custom_call.1} parent=1 // pred_fallthru
      _
    // Predicated region
    $region50: #{tpu_custom_call.1} parent=1 // pred_check
      _
    $region51: #{tpu_custom_call.1} parent=1 // pred_check_branch
      %220 = sbr.rel (0) target = $region53
    $region52: #{tpu_custom_call.1} parent=1 // pred_region
      %222 = dma.done [#allocation4], 128
    $region53: #{tpu_custom_call.1} parent=1 // pred_fallthru
      _
    %223 = vsyncpa [#allocation3], 1
    %224 = vsyncpa [#allocation6], 1
    %225 = vsyncpa [#allocation9], 1
    %226 = vsyncpa [#allocation4], 1

// kernel: tpu_custom_call.1
$region0: #{tpu_custom_call.1}
  #allocation0 [shape = 'u32[]', space=smem, size = 0x4, offset = 0x4, fixed_abs, tag = 'smem constant byte address 0x4 - core index']
  #allocation1 [shape = 'u32[72,128]{1,0:T(1,128)}', space=vmem, size = 0x9000, scoped, tag = 'internal scratch']
  %s0 = inlined_call_operand.hbm [shape: f32[8,32], index: 0, kind: input, shape index: {}]
  %s1 = inlined_call_operand.hbm [shape: f32[32,128], index: 1, kind: input, shape index: {}]
  %s2 = inlined_call_operand.vmem [shape: f32[1,128], index: 2, kind: input, shape index: {}]
  %s3 = inlined_call_operand.hbm [shape: f32[128,128], index: 3, kind: input, shape index: {}]
  %s4 = inlined_call_operand.vmem [shape: f32[1,128], index: 4, kind: input, shape index: {}]
  %s5 = inlined_call_operand.hbm [shape: f32[128,128], index: 5, kind: input, shape index: {}]
  %s6 = inlined_call_operand.vmem [shape: f32[1,128], index: 6, kind: input, shape index: {}]
  %s7 = inlined_call_operand.hbm [shape: f32[8,128], index: 7, kind: output, shape index: {}]
  %s8 = sld [smem:[#allocation0]]
  $region54: #{tpu_custom_call.1} parent=0
    _
  %s10 = ssub.s32 1, %s8
  %s11 = scalar_select 0, %s10, %s8
  $region1: #{tpu_custom_call.1} parent=0
    #allocation2 [shape = 'u8[4096]{0}', space=vmem, size = 0x1000, scoped, tag = 'input window, operand 0, single buffered']
    #allocation3 [shape = 's32[1]{0}', space=sflag, size = 0x4, scoped, tag = 'scoped memory for tpu_custom_call.1']
    #allocation4 [shape = 's32[1]{0}', space=sflag, size = 0x4, scoped, tag = 'scoped memory for tpu_custom_call.1']
    #allocation5 [shape = 'u8[16384]{0}', space=vmem, size = 0x4000, scoped, tag = 'input window, operand 1, single buffered']
    #allocation6 [shape = 's32[1]{0}', space=sflag, size = 0x4, scoped, tag = 'scoped memory for tpu_custom_call.1']
    #allocation7 [shape = 'u8[65536]{0}', space=vmem, size = 0x10000, scoped, tag = 'input window, operand 3, single buffered']
    #allocation8 [shape = 'u8[65536]{0}', space=vmem, size = 0x10000, scoped, tag = 'input window, operand 5, single buffered']
    #allocation9 [shape = 's32[1]{0}', space=sflag, size = 0x4, scoped, tag = 'scoped memory for tpu_custom_call.1']
    #allocation10 [shape = 'u8[4096]{0}', space=vmem, size = 0x1000, scoped, tag = 'output window, operand 0, single buffered']
    %12 = vsyncpa [#allocation3], 0
    %13 = vsyncpa [#allocation6], 0
    %14 = vsyncpa [#allocation9], 0
    %15 = vsyncpa [#allocation4], 0
    // Predicated region
    $region2: #{tpu_custom_call.1} parent=1 // pred_check
      _
    $region3: #{tpu_custom_call.1} parent=1 // pred_check_branch
      %17 = sbr.rel (0) target = $region5
    $region4: #{tpu_custom_call.1} parent=1 // pred_region
      %19 = vsyncadd [#allocation3], 0
      %s21 = sshll.u32 %s0, 4
      %s22 = int_to_ptr.hbm [resolvable:$true] %s21
      %s23 = sshll.u32 [#allocation2], 4
      %s24 = int_to_ptr.vmem [resolvable:$true] %s23
      %26 = dma.hbm_to_vmem [thread:$0]  %s22, 128, %s24, [#allocation3]
    $region5: #{tpu_custom_call.1} parent=1 // pred_fallthru
      _
    // Predicated region
    $region6: #{tpu_custom_call.1} parent=1 // pred_check
      _
    $region7: #{tpu_custom_call.1} parent=1 // pred_check_branch
      %28 = sbr.rel (0) target = $region9
    $region8: #{tpu_custom_call.1} parent=1 // pred_region
      %30 = vsyncadd [#allocation6], 0
      %s31 = sshll.u32 %s1, 4
      %s32 = int_to_ptr.hbm [resolvable:$true] %s31
      %s33 = sshll.u32 [#allocation5], 4
      %s34 = int_to_ptr.vmem [resolvable:$true] %s33
      %39 = dma.hbm_to_vmem [thread:$0]  %s32, 512, %s34, [#allocation6], 128, 128, 8
    $region9: #{tpu_custom_call.1} parent=1 // pred_fallthru
      _
    // Predicated region
    $region10: #{tpu_custom_call.1} parent=1 // pred_check
      _
    $region11: #{tpu_custom_call.1} parent=1 // pred_check_branch
      %41 = sbr.rel (0) target = $region13
    $region12: #{tpu_custom_call.1} parent=1 // pred_region
      _
    $region13: #{tpu_custom_call.1} parent=1 // pred_fallthru
      _
    // Predicated region
    $region14: #{tpu_custom_call.1} parent=1 // pred_check
      _
    $region15: #{tpu_custom_call.1} parent=1 // pred_check_branch
      %43 = sbr.rel (0) target = $region17
    $region16: #{tpu_custom_call.1} parent=1 // pred_region
      %45 = vsyncadd [#allocation6], 0
      %s46 = sshll.u32 %s3, 4
      %s47 = int_to_ptr.hbm [resolvable:$true] %s46
      %s48 = sshll.u32 [#allocation7], 4
      %s49 = int_to_ptr.vmem [resolvable:$true] %s48
      %54 = dma.hbm_to_vmem [thread:$0]  %s47, 2048, %s49, [#allocation6], 128, 128, 8
    $region17: #{tpu_custom_call.1} parent=1 // pred_fallthru
      _
    // Predicated region
    $region18: #{tpu_custom_call.1} parent=1 // pred_check
      _
    $region19: #{tpu_custom_call.1} parent=1 // pred_check_branch
      %56 = sbr.rel (0) target = $region21
    $region20: #{tpu_custom_call.1} parent=1 // pred_region
      _
    $region21: #{tpu_custom_call.1} parent=1 // pred_fallthru
      _
    // Predicated region
    $region22: #{tpu_custom_call.1} parent=1 // pred_check
      _
    $region23: #{tpu_custom_call.1} parent=1 // pred_check_branch
      %58 = sbr.rel (0) target = $region25
    $region24: #{tpu_custom_call.1} parent=1 // pred_region
      %60 = vsyncadd [#allocation9], 0
      %s61 = sshll.u32 %s5, 4
      %s62 = int_to_ptr.hbm [resolvable:$true] %s61
      %s63 = sshll.u32 [#allocation8], 4
      %s64 = int_to_ptr.vmem [resolvable:$true] %s63
      %69 = dma.hbm_to_vmem [thread:$0]  %s62, 2048, %s64, [#allocation9], 128, 128, 8
    $region25: #{tpu_custom_call.1} parent=1 // pred_fallthru
      _
    // Predicated region
    $region26: #{tpu_custom_call.1} parent=1 // pred_check
      _
    $region27: #{tpu_custom_call.1} parent=1 // pred_check_branch
      %71 = sbr.rel (0) target = $region29
    $region28: #{tpu_custom_call.1} parent=1 // pred_region
      _
    $region29: #{tpu_custom_call.1} parent=1 // pred_fallthru
      _
    // Predicated region
    $region30: #{tpu_custom_call.1} parent=1 // pred_check
      _
    $region31: #{tpu_custom_call.1} parent=1 // pred_check_branch
      %73 = sbr.rel (0) target = $region33
    $region32: #{tpu_custom_call.1} parent=1 // pred_region
      %75 = dma.done [#allocation3], 128
    $region33: #{tpu_custom_call.1} parent=1 // pred_fallthru
      _
    // Predicated region
    $region34: #{tpu_custom_call.1} parent=1 // pred_check
      _
    $region35: #{tpu_custom_call.1} parent=1 // pred_check_branch
      %77 = sbr.rel (0) target = $region37
    $region36: #{tpu_custom_call.1} parent=1 // pred_region
      %79 = dma.done [#allocation6], 512
    $region37: #{tpu_custom_call.1} parent=1 // pred_fallthru
      _
    // Predicated region
    $region38: #{tpu_custom_call.1} parent=1 // pred_check
      _
    $region39: #{tpu_custom_call.1} parent=1 // pred_check_branch
      %81 = sbr.rel (0) target = $region41
    $region40: #{tpu_custom_call.1} parent=1 // pred_region
      %83 = dma.done [#allocation6], 2048
    $region41: #{tpu_custom_call.1} parent=1 // pred_fallthru
      _
    // Predicated region
    $region42: #{tpu_custom_call.1} parent=1 // pred_check
      _
    $region43: #{tpu_custom_call.1} parent=1 // pred_check_branch
      %85 = sbr.rel (0) target = $region45
    $region44: #{tpu_custom_call.1} parent=1 // pred_region
      %87 = dma.done [#allocation9], 2048
    $region45: #{tpu_custom_call.1} parent=1 // pred_fallthru
      _
    %v88 = vld [vmem:[#allocation2] sm:$0xff]
    %v89 = vld [vmem:[#allocation5] sm:$0xff]
    %v90 = vld [vmem:[#allocation5 + $0x8] sm:$0xff]
    %v91 = vld [vmem:[#allocation5 + $0x10] sm:$0xff]
    %v92 = vld [vmem:[#allocation5 + $0x18] sm:$0xff]
    %v93 = vld [vmem:[%s2] sm:$0x1]
    %v95 = vperm.slane %v93, 0
    %vm97 = vcmask 261120
    %v99 = vsel %vm97, %v88, 0
    %101 = vmatpush.msra.mxu0 0.0
    %102 = vmatpush.msra.mxu0 0.0
    %103 = vmatpush.msra.mxu0 0.0
    %104 = vmatpush.msra.mxu0 0.0
    %105 = vmatpush.msra.mxu0 0.0
    %106 = vmatpush.msra.mxu0 0.0
    %107 = vmatpush.msra.mxu0 0.0
    %108 = vmatpush.msra.mxu0 0.0
    %109 = vmatpush.msra.mxu0 0.0
    %110 = vmatpush.msra.mxu0 0.0
    %111 = vmatpush.msra.mxu0 0.0
    %112 = vmatpush.msra.mxu0 0.0
    %113 = vmatpush.msra.mxu0 %v92
    %114 = vmatpush.msra.mxu0 %v91
    %115 = vmatpush.msra.mxu0 %v90
    %116 = vmatpush.msra.mxu0 %v89
    %117 = vmatmul.f32.gmra.mxu0 %v99
    %v118 = vpop.f32.mrf.mxu0
    %v119 = vadd.f32 %v95, %v118
    %120 = vdwg.mxu0
    %vm121 = vcmp.gt.f32.partialorder %v119, 0.0
    %v122 = vmul.f32 %v119, 0.01
    %v123 = vsel %vm121, %v119, %v122
    %v124 = vld [vmem:[#allocation7] sm:$0xff]
    %v125 = vld [vmem:[#allocation7 + $0x8] sm:$0xff]
    %v126 = vld [vmem:[#allocation7 + $0x10] sm:$0xff]
    %v127 = vld [vmem:[#allocation7 + $0x18] sm:$0xff]
    %v128 = vld [vmem:[#allocation7 + $0x20] sm:$0xff]
    %v129 = vld [vmem:[#allocation7 + $0x28] sm:$0xff]
    %v130 = vld [vmem:[#allocation7 + $0x30] sm:$0xff]
    %v131 = vld [vmem:[#allocation7 + $0x38] sm:$0xff]
    %v132 = vld [vmem:[#allocation7 + $0x40] sm:$0xff]
    %v133 = vld [vmem:[#allocation7 + $0x48] sm:$0xff]
    %v134 = vld [vmem:[#allocation7 + $0x50] sm:$0xff]
    %v135 = vld [vmem:[#allocation7 + $0x58] sm:$0xff]
    %v136 = vld [vmem:[#allocation7 + $0x60] sm:$0xff]
    %v137 = vld [vmem:[#allocation7 + $0x68] sm:$0xff]
    %v138 = vld [vmem:[#allocation7 + $0x70] sm:$0xff]
    %v139 = vld [vmem:[#allocation7 + $0x78] sm:$0xff]
    %v140 = vld [vmem:[%s4] sm:$0x1]
    %v142 = vperm.slane %v140, 0
    %144 = vmatpush.msra.mxu0 %v139
    %145 = vmatpush.msra.mxu0 %v138
    %146 = vmatpush.msra.mxu0 %v137
    %147 = vmatpush.msra.mxu0 %v136
    %148 = vmatpush.msra.mxu0 %v135
    %149 = vmatpush.msra.mxu0 %v134
    %150 = vmatpush.msra.mxu0 %v133
    %151 = vmatpush.msra.mxu0 %v132
    %152 = vmatpush.msra.mxu0 %v131
    %153 = vmatpush.msra.mxu0 %v130
    %154 = vmatpush.msra.mxu0 %v129
    %155 = vmatpush.msra.mxu0 %v128
    %156 = vmatpush.msra.mxu0 %v127
    %157 = vmatpush.msra.mxu0 %v126
    %158 = vmatpush.msra.mxu0 %v125
    %159 = vmatpush.msra.mxu0 %v124
    %160 = vmatmul.f32.gmra.mxu0 %v123
    %v161 = vpop.f32.mrf.mxu0
    %v162 = vadd.f32 %v142, %v161
    %163 = vdwg.mxu0
    %vm164 = vcmp.gt.f32.partialorder %v162, 0.0
    %v165 = vmul.f32 %v162, 0.01
    %v166 = vsel %vm164, %v162, %v165
    %v167 = vld [vmem:[#allocation8] sm:$0xff]
    %v168 = vld [vmem:[#allocation8 + $0x8] sm:$0xff]
    %v169 = vld [vmem:[#allocation8 + $0x10] sm:$0xff]
    %v170 = vld [vmem:[#allocation8 + $0x18] sm:$0xff]
    %v171 = vld [vmem:[#allocation8 + $0x20] sm:$0xff]
    %v172 = vld [vmem:[#allocation8 + $0x28] sm:$0xff]
    %v173 = vld [vmem:[#allocation8 + $0x30] sm:$0xff]
    %v174 = vld [vmem:[#allocation8 + $0x38] sm:$0xff]
    %v175 = vld [vmem:[#allocation8 + $0x40] sm:$0xff]
    %v176 = vld [vmem:[#allocation8 + $0x48] sm:$0xff]
    %v177 = vld [vmem:[#allocation8 + $0x50] sm:$0xff]
    %v178 = vld [vmem:[#allocation8 + $0x58] sm:$0xff]
    %v179 = vld [vmem:[#allocation8 + $0x60] sm:$0xff]
    %v180 = vld [vmem:[#allocation8 + $0x68] sm:$0xff]
    %v181 = vld [vmem:[#allocation8 + $0x70] sm:$0xff]
    %v182 = vld [vmem:[#allocation8 + $0x78] sm:$0xff]
    %v183 = vld [vmem:[%s6] sm:$0x1]
    %v185 = vperm.slane %v183, 0
    %187 = vmatpush.msra.mxu0 %v182
    %188 = vmatpush.msra.mxu0 %v181
    %189 = vmatpush.msra.mxu0 %v180
    %190 = vmatpush.msra.mxu0 %v179
    %191 = vmatpush.msra.mxu0 %v178
    %192 = vmatpush.msra.mxu0 %v177
    %193 = vmatpush.msra.mxu0 %v176
    %194 = vmatpush.msra.mxu0 %v175
    %195 = vmatpush.msra.mxu0 %v174
    %196 = vmatpush.msra.mxu0 %v173
    %197 = vmatpush.msra.mxu0 %v172
    %198 = vmatpush.msra.mxu0 %v171
    %199 = vmatpush.msra.mxu0 %v170
    %200 = vmatpush.msra.mxu0 %v169
    %201 = vmatpush.msra.mxu0 %v168
    %202 = vmatpush.msra.mxu0 %v167
    %203 = vmatmul.f32.gmra.mxu0 %v166
    %v204 = vpop.f32.mrf.mxu0
    %v205 = vadd.f32 %v185, %v204
    %206 = vdwg.mxu0
    %207 = vst [vmem:[#allocation10] sm:$0xff] %v205
    // Predicated region
    $region46: #{tpu_custom_call.1} parent=1 // pred_check
      _
    $region47: #{tpu_custom_call.1} parent=1 // pred_check_branch
      %209 = sbr.rel (0) target = $region49
    $region48: #{tpu_custom_call.1} parent=1 // pred_region
      %211 = vsyncadd [#allocation4], 0
      %s213 = sshll.u32 [#allocation10], 4
      %s214 = int_to_ptr.vmem [resolvable:$true] %s213
      %s215 = sshll.u32 %s7, 4
      %s216 = int_to_ptr.hbm [resolvable:$true] %s215
      %218 = dma.vmem_to_hbm [thread:$0]  %s214, 128, %s216, [#allocation4]
    $region49: #{tpu_custom_call.1} parent=1 // pred_fallthru
      _
    // Predicated region
    $region50: #{tpu_custom_call.1} parent=1 // pred_check
      _
    $region51: #{tpu_custom_call.1} parent=1 // pred_check_branch
      %220 = sbr.rel (0) target = $region53
    $region52: #{tpu_custom_call.1} parent=1 // pred_region
      %222 = dma.done [#allocation4], 128
    $region53: #{tpu_custom_call.1} parent=1 // pred_fallthru
      _
    %223 = vsyncpa [#allocation3], 1
    %224 = vsyncpa [#allocation6], 1
    %225 = vsyncpa [#allocation9], 1
    %226 = vsyncpa [#allocation4], 1

</llo_original>
